<compile_context>
chip_gen: v7x
topology: tpu7x:2x2x1
jax: 0.10.0
libtpu: 0.0.40
codegen_flags: <defaults>
</compile_context>

<pallas_src>
from functools import partial

import jax
import jax.numpy as jnp
from jax.experimental import pallas as pl
from jax.experimental.pallas import tpu as pltpu

INPUT_SIZE = 1
HIDDEN_SIZE = 64
OUTPUT_SIZE = 1

_MAX_TILE_N = 2048  # columns per grid step; keeps scratch ~1 MiB (v7x-safe)


def mlp_kernel(x_ref, w2p_ref, cp_ref, o_ref):
    # x_ref: (1, tile_n) -- batch on the lane axis (lane-dense).
    x = x_ref[...]

    # Unpack the column-packed per-unit constants: [w1 | b1 | b2].
    w1 = cp_ref[:, 0:1]                       # (64, 1)
    b1 = cp_ref[:, 1:2]                       # (64, 1)
    b2 = cp_ref[:, 2:3]                       # (64, 1)

    # Layer 1: Linear(1 -> 64) + ReLU.
    # K=1 matmul would waste an MXU fill; VPU broadcast outer product instead.
    h = jnp.maximum(w1 * x + b1, 0.0)         # (64,1)*(1,tn)+(64,1) -> (64, tn)

    # Layer 2: Linear(64 -> 64) + ReLU.  The real matmul -> MXU.
    w2 = w2p_ref[0:HIDDEN_SIZE, :]            # (64, 64)
    h = jnp.dot(w2, h, preferred_element_type=jnp.float32) + b2
    h = jnp.maximum(h, 0.0)                   # (64, tn)

    # Layer 3: Linear(64 -> 1), no activation, as a (1,64)@(64,tn) MXU matmul
    # (moves the multiply+reduce off the saturated VALU/XLU; output stays
    # (1, tile_n) lane-dense).
    w3 = w2p_ref[HIDDEN_SIZE:HIDDEN_SIZE + 1, :]            # (1, 64)
    b3 = w2p_ref[HIDDEN_SIZE + 1:HIDDEN_SIZE + 2, 0:1]      # (1, 1)
    y = jnp.dot(w3, h, preferred_element_type=jnp.float32) + b3
    o_ref[...] = y.astype(o_ref.dtype)        # (1, tn)


def _pick_tile_n(n):
    """Columns per grid step: a 128-multiple (unmasked vst), capped at
    _MAX_TILE_N (VMEM-safe on every generation incl. v7x's 64 MiB/TC), chosen
    so the grid has an even number of >=2 steps whenever n is large enough
    (keeps both v7x TensorCores busy under dimension_semantics=("parallel",))."""
    if n <= 256:
        return 128
    target_steps = max(2, 2 * pl.cdiv(n, 2 * _MAX_TILE_N))  # even step count
    tile = pl.cdiv(pl.cdiv(n, target_steps), 128) * 128
    return int(max(128, min(_MAX_TILE_N, tile)))


@partial(jax.jit, static_argnames=("tile_n",))
def mlp_forward(x, params, *, tile_n=None):
    """x: (N, INPUT_SIZE) float32.  Returns (N, OUTPUT_SIZE) float32."""
    w1, b1, w2, b2, w3, b3 = params           # PyTorch-convention shapes
    N = x.shape[0]
    if tile_n is None:
        tile_n = _pick_tile_n(N)

    # Transposed, lane-dense layout: (N, 1) -> (1, N).  INPUT_SIZE == 1 so this
    # reshape is exactly the transpose (layout plumbing, fused under jit).
    x_t = x.reshape(INPUT_SIZE, N)

    # Pad batch to a multiple of tile_n (no divisibility requirement on N).
    # Padded columns compute garbage that is sliced off; no NaN propagation.
    n_blocks = pl.cdiv(N, tile_n)
    n_pad = n_blocks * tile_n
    if n_pad != N:
        x_t = jnp.pad(x_t, ((0, 0), (0, n_pad - N)))

    # Pack the constants into two operands (two prologue DMAs instead of six).
    #   w2p rows 0..63 = w2, row 64 = w3, row 65 = [b3, 0, ...]   -> (66, 64)
    #   colpack cols   = [w1 | b1 | b2]                           -> (64, 3)
    b3_row = jnp.pad(b3.reshape(1, 1), ((0, 0), (0, HIDDEN_SIZE - 1)))
    w2p = jnp.concatenate([w2, w3, b3_row], axis=0)
    colpack = jnp.concatenate([w1, b1, b2], axis=1)

    out_t = pl.pallas_call(
        mlp_kernel,
        out_shape=jax.ShapeDtypeStruct((OUTPUT_SIZE, n_pad), jnp.float32),
        grid=(n_blocks,),
        in_specs=[
            pl.BlockSpec((INPUT_SIZE, tile_n), lambda i: (0, i)),   # x tile
            pl.BlockSpec(w2p.shape, lambda i: (0, 0)),              # w2|w3|b3
            pl.BlockSpec(colpack.shape, lambda i: (0, 0)),          # w1|b1|b2
        ],
        out_specs=pl.BlockSpec((OUTPUT_SIZE, tile_n), lambda i: (0, i)),
        compiler_params=pltpu.CompilerParams(
            dimension_semantics=("parallel",)),
    )(x_t, w2p, colpack)

    # Back to the PyTorch (N, 1) layout, dropping padded columns.
    return out_t[:, :N].T


def init_params(key):
    """Deterministic init mirroring nn.Linear's U(-1/sqrt(fan_in), +1/sqrt(fan_in)).

    Weights stored PyTorch-style as (out_features, in_features); biases as
    (out_features, 1) columns for the column-wise kernel layout.
    """
    ks = jax.random.split(key, 6)

    def linear(kw, kb, fan_in, fan_out):
        bound = 1.0 / jnp.sqrt(jnp.float32(fan_in))
        w = jax.random.uniform(kw, (fan_out, fan_in), jnp.float32, -bound, bound)
        b = jax.random.uniform(kb, (fan_out, 1), jnp.float32, -bound, bound)
        return w, b

    w1, b1 = linear(ks[0], ks[1], INPUT_SIZE, HIDDEN_SIZE)    # (64,1), (64,1)
    w2, b2 = linear(ks[2], ks[3], HIDDEN_SIZE, HIDDEN_SIZE)   # (64,64), (64,1)
    w3, b3 = linear(ks[4], ks[5], HIDDEN_SIZE, OUTPUT_SIZE)   # (1,64), (1,1)
    return (w1, b1, w2, b2, w3, b3)


if __name__ == "__main__":
    key = jax.random.PRNGKey(0)
    k_param, _ = jax.random.split(key)

    params = init_params(k_param)

    # 1-D points in [0, 2], like np.linspace(0.0, 2.0, 1000) in the reference.
    # N=1000 is not a multiple of the chosen tile (512): exercises the padding
    # path and yields an even 2-step grid (both v7x TensorCores get work).
    N = 1000
    x = jnp.linspace(0.0, 2.0, N, dtype=jnp.float32).reshape(N, INPUT_SIZE)

    y = mlp_forward(x, params)
    jax.block_until_ready(y)

    # Pure-JAX reference check of the fused kernel (PyTorch row-wise math,
    # same default matmul precision as the kernel's dots).
    w1, b1, w2, b2, w3, b3 = params
    h = jnp.maximum(x @ w1.T + b1.T, 0.0)
    h = jnp.maximum(h @ w2.T + b2.T, 0.0)
    y_ref = h @ w3.T + b3.T
    assert y.shape == (N, OUTPUT_SIZE)
    assert jnp.allclose(y, y_ref, atol=1e-5, rtol=1e-5)

    print("KERNEL_OK")
</pallas_src>

<mosaic_0001>
module attributes {stable_mosaic.version = 11 : i64} {
  func.func @mlp_kernel(%arg0: i32, %arg1: memref<1x512xf32, #tpu.memory_space<vmem>>, %arg2: memref<66x64xf32, #tpu.memory_space<vmem>>, %arg3: memref<64x3xf32, #tpu.memory_space<vmem>>, %arg4: memref<1x512xf32, #tpu.memory_space<vmem>>) attributes {dimension_semantics = [#tpu.dimension_semantics<parallel>], iteration_bounds = array<i64: 2>, scalar_prefetch = 0 : i64, scratch_operands = 0 : i64, tpu.core_type = #tpu.core_type<tc>, window_params = [{transform_indices = @transform_0, window_bounds = array<i64: 1, 512>}, {pipeline_mode = #tpu.pipeline_mode<synchronous>, transform_indices = @transform_1, window_bounds = array<i64: 66, 64>}, {pipeline_mode = #tpu.pipeline_mode<synchronous>, transform_indices = @transform_2, window_bounds = array<i64: 64, 3>}, {transform_indices = @transform_3, window_bounds = array<i64: 1, 512>}]} {
    %c0 = arith.constant 0 : index
    %c0_0 = arith.constant 0 : index
    %0 = vector.load %arg1[%c0, %c0_0] : memref<1x512xf32, #tpu.memory_space<vmem>>, vector<1x512xf32>
    %c0_1 = arith.constant 0 : index
    %c0_2 = arith.constant 0 : index
    %1 = vector.load %arg3[%c0_1, %c0_2] : memref<64x3xf32, #tpu.memory_space<vmem>>, vector<64x1xf32>
    %c0_3 = arith.constant 0 : index
    %c1 = arith.constant 1 : index
    %2 = vector.load %arg3[%c0_3, %c1] : memref<64x3xf32, #tpu.memory_space<vmem>>, vector<64x1xf32>
    %c0_4 = arith.constant 0 : index
    %c2 = arith.constant 2 : index
    %3 = vector.load %arg3[%c0_4, %c2] : memref<64x3xf32, #tpu.memory_space<vmem>>, vector<64x1xf32>
    %4 = vector.broadcast %1 : vector<64x1xf32> to vector<64x512xf32>
    %5 = vector.broadcast %0 : vector<1x512xf32> to vector<64x512xf32>
    %6 = arith.mulf %4, %5 : vector<64x512xf32>
    %7 = vector.broadcast %2 : vector<64x1xf32> to vector<64x512xf32>
    %8 = arith.addf %6, %7 : vector<64x512xf32>
    %cst = arith.constant 0.000000e+00 : f32
    %9 = vector.broadcast %cst : f32 to vector<64x512xf32>
    %10 = arith.maximumf %8, %9 : vector<64x512xf32>
    %c0_5 = arith.constant 0 : index
    %c0_6 = arith.constant 0 : index
    %11 = vector.load %arg2[%c0_5, %c0_6] : memref<66x64xf32, #tpu.memory_space<vmem>>, vector<64x64xf32>
    %cst_7 = arith.constant dense<0.000000e+00> : vector<64x512xf32>
    %12 = tpu.matmul %11, %10, %cst_7 {dimension_numbers = #tpu.dot_dimension_numbers<[1], [0], [0], [1], [0, 0, 1, 1], [], []>} : vector<64x64xf32>, vector<64x512xf32>, vector<64x512xf32> -> vector<64x512xf32>
    %13 = vector.broadcast %3 : vector<64x1xf32> to vector<64x512xf32>
    %14 = arith.addf %12, %13 : vector<64x512xf32>
    %cst_8 = arith.constant 0.000000e+00 : f32
    %15 = vector.broadcast %cst_8 : f32 to vector<64x512xf32>
    %16 = arith.maximumf %14, %15 : vector<64x512xf32>
    %c64 = arith.constant 64 : index
    %c0_9 = arith.constant 0 : index
    %17 = vector.load %arg2[%c64, %c0_9] : memref<66x64xf32, #tpu.memory_space<vmem>>, vector<1x64xf32>
    %c65 = arith.constant 65 : index
    %c0_10 = arith.constant 0 : index
    %18 = vector.load %arg2[%c65, %c0_10] : memref<66x64xf32, #tpu.memory_space<vmem>>, vector<1x1xf32>
    %cst_11 = arith.constant dense<0.000000e+00> : vector<1x512xf32>
    %19 = tpu.matmul %17, %16, %cst_11 {dimension_numbers = #tpu.dot_dimension_numbers<[1], [0], [0], [1], [0, 0, 1, 1], [], []>} : vector<1x64xf32>, vector<64x512xf32>, vector<1x512xf32> -> vector<1x512xf32>
    %20 = vector.broadcast %18 : vector<1x1xf32> to vector<1x512xf32>
    %21 = arith.addf %19, %20 : vector<1x512xf32>
    %c0_12 = arith.constant 0 : index
    %c0_13 = arith.constant 0 : index
    %22 = vector.load %arg4[%c0_12, %c0_13] : memref<1x512xf32, #tpu.memory_space<vmem>>, vector<1x512xf32>
    tpu.vector_store %arg4[%c0_12, %c0_13], %21 {strides = array<i32>} : memref<1x512xf32, #tpu.memory_space<vmem>>, vector<1x512xf32>,
    return
  }
  func.func @transform_0(%arg0: i32) -> (i32, i32) {
    %c0_i32 = arith.constant 0 : i32
    %c0_i32_0 = arith.constant 0 : i32
    return %c0_i32, %arg0 : i32, i32
  }
  func.func @transform_1(%arg0: i32) -> (i32, i32) {
    %c0_i32 = arith.constant 0 : i32
    %c0_i32_0 = arith.constant 0 : i32
    %c0_i32_1 = arith.constant 0 : i32
    return %c0_i32, %c0_i32_0 : i32, i32
  }
  func.func @transform_2(%arg0: i32) -> (i32, i32) {
    %c0_i32 = arith.constant 0 : i32
    %c0_i32_0 = arith.constant 0 : i32
    %c0_i32_1 = arith.constant 0 : i32
    return %c0_i32, %c0_i32_0 : i32, i32
  }
  func.func @transform_3(%arg0: i32) -> (i32, i32) {
    %c0_i32 = arith.constant 0 : i32
    %c0_i32_0 = arith.constant 0 : i32
    return %c0_i32, %arg0 : i32, i32
  }
}

</mosaic_0001>

<llo_original>
// kernel: mlp_forward.1
$region0: #{mlp_forward.1}
  #allocation0 [shape = 'u32[]', space=smem, size = 0x4, offset = 0x4, fixed_abs, tag = 'smem constant byte address 0x4 - core index']
  #allocation1 [shape = 'u32[144,128]{1,0:T(1,128)}', space=vmem, size = 0x12000, scoped, tag = 'internal scratch']
  %s0 = inlined_call_operand.vmem [shape: f32[1,1024], index: 0, kind: input, shape index: {}]
  %s1 = inlined_call_operand.vmem [shape: f32[66,64], index: 1, kind: input, shape index: {}]
  %s2 = inlined_call_operand.vmem [shape: f32[64,3], index: 2, kind: input, shape index: {}]
  %s3 = inlined_call_operand.vmem [shape: f32[1,1024], index: 3, kind: output, shape index: {}]
  %s4 = sld [smem:[#allocation0]]
  $region45: #{mlp_forward.1} parent=0
    _
  %s6 = ssub.s32 1, %s4
  %s7 = scalar_select 0, %s6, %s4
  loop: start=0, step=1, limit=4
  $region2: #{mlp_forward.1} parent=0 // loop_pre_header
    _
  $region3: #{mlp_forward.1} parent=0 // loop_header
    %s9 = sphi 0, %s13
    %p10 = scmp.ge.s32.totalorder %s9, 4
    %s19 = sphi 0, %s21
    %s22 = sphi 0, %s19
    %s23 = sphi 0, %s22
    %s39 = sphi 0, %s23
    %s43 = sphi 0, %s43
    %s45 = sphi 0, %s43
    %s46 = sphi 0, %s45
    %s60 = sphi 0, %s46
    %s64 = sphi 0, %s64
    %s66 = sphi 0, %s64
    %s67 = sphi 0, %s66
    %s81 = sphi 0, %s67
    %s87 = sphi 0, %s89
    %s90 = sphi 0, %s87
    %s91 = sphi 0, %s90
    %s107 = sphi 0, %s91
  $region4: #{mlp_forward.1} parent=0 // loop_header_branch
    %12 = sbr.rel (%p10) target = $region8
  $region5: #{mlp_forward.1} parent=0 // loop_body
    %s14 = ssub.s32 %s9, 1
    %s15 = ssub.s32 %s9, 2
    %s16 = sadd.s32 %s9, 1
    %s17 = ssub.s32 %s9, %s16
    %p18 = scmp.eq.s32.totalorder %s17, 0
    %s20 = sadd.s32 %s19, 1
    %s21 = scalar_select %p18, %s19, %s20
    %p24 = pneg %p18
    %p25 = scmp.eq.s32.totalorder %s9, 1
    %p26 = por %p24, %p25
    %p27 = scmp.ne.s32.totalorder %s19, %s22
    %p28 = scmp.eq.s32.totalorder %s9, 0
    %p29 = por %p27, %p28
    %p30 = scmp.ne.s32.totalorder %s19, %s22
    %p31 = scmp.eq.s32.totalorder %s14, 1
    %p32 = por %p30, %p31
    %p33 = scmp.ne.s32.totalorder %s22, %s23
    %p34 = scmp.eq.s32.totalorder %s14, 0
    %p35 = por %p33, %p34
    %p36 = scmp.ne.s32.totalorder %s22, %s23
    %p37 = scmp.eq.s32.totalorder %s15, 1
    %p38 = por %p36, %p37
    %p40 = scmp.ne.s32.totalorder %s23, %s39
    %p41 = scmp.eq.s32.totalorder %s15, 0
    %p42 = por %p40, %p41
    %s44 = sadd.s32 %s43, 1
    %p47 = scmp.eq.s32.totalorder %s9, 1
    %p48 = scmp.ne.s32.totalorder %s43, %s45
    %p49 = scmp.eq.s32.totalorder %s9, 0
    %p50 = por %p48, %p49
    %p51 = scmp.ne.s32.totalorder %s43, %s45
    %p52 = scmp.eq.s32.totalorder %s14, 1
    %p53 = por %p51, %p52
    %p54 = scmp.ne.s32.totalorder %s45, %s46
    %p55 = scmp.eq.s32.totalorder %s14, 0
    %p56 = por %p54, %p55
    %p57 = scmp.ne.s32.totalorder %s45, %s46
    %p58 = scmp.eq.s32.totalorder %s15, 1
    %p59 = por %p57, %p58
    %p61 = scmp.ne.s32.totalorder %s46, %s60
    %p62 = scmp.eq.s32.totalorder %s15, 0
    %p63 = por %p61, %p62
    %s65 = sadd.s32 %s64, 1
    %p68 = scmp.eq.s32.totalorder %s9, 1
    %p69 = scmp.ne.s32.totalorder %s64, %s66
    %p70 = scmp.eq.s32.totalorder %s9, 0
    %p71 = por %p69, %p70
    %p72 = scmp.ne.s32.totalorder %s64, %s66
    %p73 = scmp.eq.s32.totalorder %s14, 1
    %p74 = por %p72, %p73
    %p75 = scmp.ne.s32.totalorder %s66, %s67
    %p76 = scmp.eq.s32.totalorder %s14, 0
    %p77 = por %p75, %p76
    %p78 = scmp.ne.s32.totalorder %s66, %s67
    %p79 = scmp.eq.s32.totalorder %s15, 1
    %p80 = por %p78, %p79
    %p82 = scmp.ne.s32.totalorder %s67, %s81
    %p83 = scmp.eq.s32.totalorder %s15, 0
    %p84 = por %p82, %p83
    %s85 = ssub.s32 %s9, %s16
    %p86 = scmp.eq.s32.totalorder %s85, 0
    %s88 = sadd.s32 %s87, 1
    %s89 = scalar_select %p86, %s87, %s88
    %p92 = pneg %p86
    %p93 = scmp.eq.s32.totalorder %s9, 1
    %p94 = por %p92, %p93
    %p95 = scmp.ne.s32.totalorder %s87, %s90
    %p96 = scmp.eq.s32.totalorder %s9, 0
    %p97 = por %p95, %p96
    %p98 = scmp.ne.s32.totalorder %s87, %s90
    %p99 = scmp.eq.s32.totalorder %s14, 1
    %p100 = por %p98, %p99
    %p101 = scmp.ne.s32.totalorder %s90, %s91
    %p102 = scmp.eq.s32.totalorder %s14, 0
    %p103 = por %p101, %p102
    %p104 = scmp.ne.s32.totalorder %s90, %s91
    %p105 = scmp.eq.s32.totalorder %s15, 1
    %p106 = por %p104, %p105
    %p108 = scmp.ne.s32.totalorder %s91, %s107
    %p109 = scmp.eq.s32.totalorder %s15, 0
    %p110 = por %p108, %p109
    %p111 = scmp.le.s32.totalorder 1, %s9
    %p112 = scmp.lt.s32.totalorder %s9, 3
    %p113 = pnand %p111, %p112
    %p114 = pneg %p113
    // Predicated region
    $region9: #{mlp_forward.1} parent=5 // pred_check
      _
    $region10: #{mlp_forward.1} parent=5 // pred_check_branch
      %116 = sbr.rel (%p113) target = $region12
    $region11: #{mlp_forward.1} parent=5 // pred_region
      %s117 = ssub.s32 %s9, 1
      // Predicated region
      $region13: #{mlp_forward.1} parent=11 // pred_check
        %p118 = pneg %p56
      $region14: #{mlp_forward.1} parent=11 // pred_check_branch
        %120 = sbr.rel (%p118) target = $region16
      $region15: #{mlp_forward.1} parent=11 // pred_region
        _
      $region16: #{mlp_forward.1} parent=11 // pred_fallthru
        _
      // Predicated region
      $region17: #{mlp_forward.1} parent=11 // pred_check
        %p121 = pneg %p77
      $region18: #{mlp_forward.1} parent=11 // pred_check_branch
        %123 = sbr.rel (%p121) target = $region20
      $region19: #{mlp_forward.1} parent=11 // pred_region
        _
      $region20: #{mlp_forward.1} parent=11 // pred_fallthru
        _
    $region12: #{mlp_forward.1} parent=5 // pred_fallthru
      _
    %p124 = scmp.lt.s32.totalorder %s9, 2
    // Predicated region
    $region21: #{mlp_forward.1} parent=5 // pred_check
      %p125 = pneg %p124
    $region22: #{mlp_forward.1} parent=5 // pred_check_branch
      %127 = sbr.rel (%p125) target = $region24
    $region23: #{mlp_forward.1} parent=5 // pred_region
      // Predicated region
      $region25: #{mlp_forward.1} parent=23 // pred_check
        %p128 = pneg %p29
      $region26: #{mlp_forward.1} parent=23 // pred_check_branch
        %130 = sbr.rel (%p128) target = $region28
      $region27: #{mlp_forward.1} parent=23 // pred_region
        %s131 = smul.u32 4, %s9
        %p132 = scmp.lt.s32.totalorder %s131, 7
        %s133 = scalar_select %p132, %s131, 7
        %s134 = scalar_lea.vmem %s0, %s133
        %s135 = smul.u32 4, %s9
      $region28: #{mlp_forward.1} parent=23 // pred_fallthru
        _
    $region24: #{mlp_forward.1} parent=5 // pred_fallthru
      _
    %p136 = scmp.le.s32.totalorder 1, %s9
    %p137 = scmp.lt.s32.totalorder %s9, 3
    %p138 = pnand %p136, %p137
    %p139 = pneg %p138
    // Predicated region
    $region29: #{mlp_forward.1} parent=5 // pred_check
      _
    $region30: #{mlp_forward.1} parent=5 // pred_check_branch
      %141 = sbr.rel (%p138) target = $region32
    $region31: #{mlp_forward.1} parent=5 // pred_region
      %s142 = ssub.s32 %s9, 1
      %s143 = smul.u32 4, %s14
      %p144 = scmp.lt.s32.totalorder %s143, 7
      %s145 = scalar_select %p144, %s143, 7
      %s146 = scalar_lea.vmem %s0, %s145
      %p147 = pneg %p35
      %p148 = pneg %p32
      %p149 = pneg %p56
      %p150 = pneg %p53
      %p151 = pneg %p77
      %p152 = pneg %p74
      %p153 = pneg %p103
      %p154 = pneg %p100
      %s155 = smul.u32 4, %s14
      %p156 = scmp.lt.s32.totalorder %s155, 7
      %s157 = scalar_select %p156, %s155, 7
      %s158 = scalar_lea.vmem %s3, %s157
      %s159 = smul.u32 4, %s14
      %p160 = scmp.lt.s32.totalorder %s159, 7
      %s161 = scalar_select %p160, %s159, 7
      %s162 = scalar_lea.vmem %s0, %s161
      %s163 = smul.u32 4, %s14
      %s164 = smul.u32 4, %s14
      %p165 = scmp.lt.s32.totalorder %s164, 7
      %s166 = scalar_select %p165, %s164, 7
      %s167 = scalar_lea.vmem %s3, %s166
      %s168 = smul.u32 4, %s14
      %v169 = vld [vmem:[%s162] sm:$0xf]
      %v170 = vld [vmem:[%s2] sm:$0xff]
      %v171 = vld [vmem:[%s2 + $0x8] sm:$0xff]
      %v172 = vld [vmem:[%s2 + $0x10] sm:$0xff]
      %v173 = vld [vmem:[%s2 + $0x18] sm:$0xff]
      %v174 = vld [vmem:[%s2 + $0x20] sm:$0xff]
      %v175 = vld [vmem:[%s2 + $0x28] sm:$0xff]
      %v176 = vld [vmem:[%s2 + $0x30] sm:$0xff]
      %v177 = vld [vmem:[%s2 + $0x38] sm:$0xff]
      %179 = vset.pattern.permute.xlu0 0
      %180 = vperm.xlu0 %179, %v170
      %v181 = vpop.permute.xlu0 %180
      %184 = vset.pattern.permute.xlu0 0
      %185 = vperm.xlu0 %184, %v171
      %v186 = vpop.permute.xlu0 %185
      %189 = vset.pattern.permute.xlu0 0
      %190 = vperm.xlu0 %189, %v172
      %v191 = vpop.permute.xlu0 %190
      %194 = vset.pattern.permute.xlu0 0
      %195 = vperm.xlu0 %194, %v173
      %v196 = vpop.permute.xlu0 %195
      %199 = vset.pattern.permute.xlu0 0
      %200 = vperm.xlu0 %199, %v174
      %v201 = vpop.permute.xlu0 %200
      %204 = vset.pattern.permute.xlu0 0
      %205 = vperm.xlu0 %204, %v175
      %v206 = vpop.permute.xlu0 %205
      %209 = vset.pattern.permute.xlu0 0
      %210 = vperm.xlu0 %209, %v176
      %v211 = vpop.permute.xlu0 %210
      %214 = vset.pattern.permute.xlu0 0
      %215 = vperm.xlu0 %214, %v177
      %v216 = vpop.permute.xlu0 %215
      %v219 = vlaneseq
      %v220 = vshrl.u32 %v219, 7
      %v221 = vsub.s32 0, %v220
      %v222 = vrot.slane %v169, %v221
      %v223 = vlaneseq
      %v224 = vshrl.u32 %v223, 7
      %v225 = vsub.s32 1, %v224
      %v226 = vrot.slane %v169, %v225
      %v227 = vlaneseq
      %v228 = vshrl.u32 %v227, 7
      %v229 = vsub.s32 2, %v228
      %v230 = vrot.slane %v169, %v229
      %v231 = vlaneseq
      %v232 = vshrl.u32 %v231, 7
      %v233 = vsub.s32 3, %v232
      %v234 = vrot.slane %v169, %v233
      %v239 = vmul.f32 %v181, %v222
      %v240 = vmul.f32 %v181, %v226
      %v241 = vmul.f32 %v181, %v230
      %v242 = vmul.f32 %v181, %v234
      %v243 = vmul.f32 %v186, %v222
      %v244 = vmul.f32 %v186, %v226
      %v245 = vmul.f32 %v186, %v230
      %v246 = vmul.f32 %v186, %v234
      %v247 = vmul.f32 %v191, %v222
      %v248 = vmul.f32 %v191, %v226
      %v249 = vmul.f32 %v191, %v230
      %v250 = vmul.f32 %v191, %v234
      %v251 = vmul.f32 %v196, %v222
      %v252 = vmul.f32 %v196, %v226
      %v253 = vmul.f32 %v196, %v230
      %v254 = vmul.f32 %v196, %v234
      %v255 = vmul.f32 %v201, %v222
      %v256 = vmul.f32 %v201, %v226
      %v257 = vmul.f32 %v201, %v230
      %v258 = vmul.f32 %v201, %v234
      %v259 = vmul.f32 %v206, %v222
      %v260 = vmul.f32 %v206, %v226
      %v261 = vmul.f32 %v206, %v230
      %v262 = vmul.f32 %v206, %v234
      %v263 = vmul.f32 %v211, %v222
      %v264 = vmul.f32 %v211, %v226
      %v265 = vmul.f32 %v211, %v230
      %v266 = vmul.f32 %v211, %v234
      %v267 = vmul.f32 %v216, %v222
      %v268 = vmul.f32 %v216, %v226
      %v269 = vmul.f32 %v216, %v230
      %v270 = vmul.f32 %v216, %v234
      %271 = vset.pattern.permute.xlu0 1
      %272 = vperm.xlu0 %271, %v170
      %v273 = vpop.permute.xlu0 %272
      %275 = vset.pattern.permute.xlu0 1
      %276 = vperm.xlu0 %275, %v171
      %v277 = vpop.permute.xlu0 %276
      %279 = vset.pattern.permute.xlu0 1
      %280 = vperm.xlu0 %279, %v172
      %v281 = vpop.permute.xlu0 %280
      %283 = vset.pattern.permute.xlu0 1
      %284 = vperm.xlu0 %283, %v173
      %v285 = vpop.permute.xlu0 %284
      %287 = vset.pattern.permute.xlu0 1
      %288 = vperm.xlu0 %287, %v174
      %v289 = vpop.permute.xlu0 %288
      %291 = vset.pattern.permute.xlu0 1
      %292 = vperm.xlu0 %291, %v175
      %v293 = vpop.permute.xlu0 %292
      %295 = vset.pattern.permute.xlu0 1
      %296 = vperm.xlu0 %295, %v176
      %v297 = vpop.permute.xlu0 %296
      %299 = vset.pattern.permute.xlu0 1
      %300 = vperm.xlu0 %299, %v177
      %v301 = vpop.permute.xlu0 %300
      %v303 = vadd.f32 %v239, %v273
      %v304 = vadd.f32 %v240, %v273
      %v305 = vadd.f32 %v241, %v273
      %v306 = vadd.f32 %v242, %v273
      %v307 = vadd.f32 %v243, %v277
      %v308 = vadd.f32 %v244, %v277
      %v309 = vadd.f32 %v245, %v277
      %v310 = vadd.f32 %v246, %v277
      %v311 = vadd.f32 %v247, %v281
      %v312 = vadd.f32 %v248, %v281
      %v313 = vadd.f32 %v249, %v281
      %v314 = vadd.f32 %v250, %v281
      %v315 = vadd.f32 %v251, %v285
      %v316 = vadd.f32 %v252, %v285
      %v317 = vadd.f32 %v253, %v285
      %v318 = vadd.f32 %v254, %v285
      %v319 = vadd.f32 %v255, %v289
      %v320 = vadd.f32 %v256, %v289
      %v321 = vadd.f32 %v257, %v289
      %v322 = vadd.f32 %v258, %v289
      %v323 = vadd.f32 %v259, %v293
      %v324 = vadd.f32 %v260, %v293
      %v325 = vadd.f32 %v261, %v293
      %v326 = vadd.f32 %v262, %v293
      %v327 = vadd.f32 %v263, %v297
      %v328 = vadd.f32 %v264, %v297
      %v329 = vadd.f32 %v265, %v297
      %v330 = vadd.f32 %v266, %v297
      %v331 = vadd.f32 %v267, %v301
      %v332 = vadd.f32 %v268, %v301
      %v333 = vadd.f32 %v269, %v301
      %v334 = vadd.f32 %v270, %v301
      %v335 = vmax.f32 %v303, 0.0
      %v336 = vmax.f32 %v304, 0.0
      %v337 = vmax.f32 %v305, 0.0
      %v338 = vmax.f32 %v306, 0.0
      %v339 = vmax.f32 %v307, 0.0
      %v340 = vmax.f32 %v308, 0.0
      %v341 = vmax.f32 %v309, 0.0
      %v342 = vmax.f32 %v310, 0.0
      %v343 = vmax.f32 %v311, 0.0
      %v344 = vmax.f32 %v312, 0.0
      %v345 = vmax.f32 %v313, 0.0
      %v346 = vmax.f32 %v314, 0.0
      %v347 = vmax.f32 %v315, 0.0
      %v348 = vmax.f32 %v316, 0.0
      %v349 = vmax.f32 %v317, 0.0
      %v350 = vmax.f32 %v318, 0.0
      %v351 = vmax.f32 %v319, 0.0
      %v352 = vmax.f32 %v320, 0.0
      %v353 = vmax.f32 %v321, 0.0
      %v354 = vmax.f32 %v322, 0.0
      %v355 = vmax.f32 %v323, 0.0
      %v356 = vmax.f32 %v324, 0.0
      %v357 = vmax.f32 %v325, 0.0
      %v358 = vmax.f32 %v326, 0.0
      %v359 = vmax.f32 %v327, 0.0
      %v360 = vmax.f32 %v328, 0.0
      %v361 = vmax.f32 %v329, 0.0
      %v362 = vmax.f32 %v330, 0.0
      %v363 = vmax.f32 %v331, 0.0
      %v364 = vmax.f32 %v332, 0.0
      %v365 = vmax.f32 %v333, 0.0
      %v366 = vmax.f32 %v334, 0.0
      %v367 = vld [vmem:[%s1] sm:$0xff]
      %v368 = vld [vmem:[%s1 + $0x8] sm:$0xff]
      %v369 = vld [vmem:[%s1 + $0x10] sm:$0xff]
      %v370 = vld [vmem:[%s1 + $0x18] sm:$0xff]
      %v371 = vld [vmem:[%s1 + $0x20] sm:$0xff]
      %v372 = vld [vmem:[%s1 + $0x28] sm:$0xff]
      %v373 = vld [vmem:[%s1 + $0x30] sm:$0xff]
      %v374 = vld [vmem:[%s1 + $0x38] sm:$0xff]
      %375 = vset.pattern.permute.xlu0 2
      %376 = vperm.xlu0 %375, %v170
      %v377 = vpop.permute.xlu0 %376
      %379 = vset.pattern.permute.xlu0 2
      %380 = vperm.xlu0 %379, %v171
      %v381 = vpop.permute.xlu0 %380
      %383 = vset.pattern.permute.xlu0 2
      %384 = vperm.xlu0 %383, %v172
      %v385 = vpop.permute.xlu0 %384
      %387 = vset.pattern.permute.xlu0 2
      %388 = vperm.xlu0 %387, %v173
      %v389 = vpop.permute.xlu0 %388
      %391 = vset.pattern.permute.xlu0 2
      %392 = vperm.xlu0 %391, %v174
      %v393 = vpop.permute.xlu0 %392
      %395 = vset.pattern.permute.xlu0 2
      %396 = vperm.xlu0 %395, %v175
      %v397 = vpop.permute.xlu0 %396
      %399 = vset.pattern.permute.xlu0 2
      %400 = vperm.xlu0 %399, %v176
      %v401 = vpop.permute.xlu0 %400
      %403 = vset.pattern.permute.xlu0 2
      %404 = vperm.xlu0 %403, %v177
      %v405 = vpop.permute.xlu0 %404
      %vm407 = vcmask 523264
      %v409 = vsel %vm407, %v367, 0
      %v412 = vsel %vm407, %v368, 0
      %v415 = vsel %vm407, %v369, 0
      %v418 = vsel %vm407, %v370, 0
      %v421 = vsel %vm407, %v371, 0
      %v424 = vsel %vm407, %v372, 0
      %v427 = vsel %vm407, %v373, 0
      %v430 = vsel %vm407, %v374, 0
      %432 = vmatprep.subr.mxu0 %v336
      %433 = vmatpush1.msra.mxu0 %v335
      %434 = vmatprep.subr.mxu0 %v340
      %435 = vmatpush1.msra.mxu0 %v339
      %436 = vmatprep.subr.mxu0 %v344
      %437 = vmatpush1.msra.mxu0 %v343
      %438 = vmatprep.subr.mxu0 %v348
      %439 = vmatpush1.msra.mxu0 %v347
      %440 = vmatprep.subr.mxu0 %v352
      %441 = vmatpush1.msra.mxu0 %v351
      %442 = vmatprep.subr.mxu0 %v356
      %443 = vmatpush1.msra.mxu0 %v355
      %444 = vmatprep.subr.mxu0 %v360
      %445 = vmatpush1.msra.mxu0 %v359
      %446 = vmatprep.subr.mxu0 %v364
      %447 = vmatpush1.msra.mxu0 %v363
      %448 = vmatprep.subr.mxu0 0.0
      %449 = vmatpush1.msra.mxu0 0.0
      %450 = vmatprep.subr.mxu0 0.0
      %451 = vmatpush1.msra.mxu0 0.0
      %452 = vmatprep.subr.mxu0 0.0
      %453 = vmatpush1.msra.mxu0 0.0
      %454 = vmatprep.subr.mxu0 0.0
      %455 = vmatpush1.msra.mxu0 0.0
      %456 = vmatprep.subr.mxu0 0.0
      %457 = vmatpush1.msra.mxu0 0.0
      %458 = vmatprep.subr.mxu0 0.0
      %459 = vmatpush1.msra.mxu0 0.0
      %460 = vmatprep.subr.mxu0 0.0
      %461 = vmatpush1.msra.mxu0 0.0
      %462 = vmatprep.subr.mxu0 0.0
      %463 = vmatpush1.msra.mxu0 0.0
      %464 = vmatprep.subr.mxu0 0.0
      %465 = vmatpush1.msra.mxu0 0.0
      %466 = vmatprep.subr.mxu0 0.0
      %467 = vmatpush1.msra.mxu0 0.0
      %468 = vmatprep.subr.mxu0 0.0
      %469 = vmatpush1.msra.mxu0 0.0
      %470 = vmatprep.subr.mxu0 0.0
      %471 = vmatpush1.msra.mxu0 0.0
      %472 = vmatprep.subr.mxu0 0.0
      %473 = vmatpush1.msra.mxu0 0.0
      %474 = vmatprep.subr.mxu0 0.0
      %475 = vmatpush1.msra.mxu0 0.0
      %476 = vmatprep.subr.mxu0 0.0
      %477 = vmatpush1.msra.mxu0 0.0
      %478 = vmatprep.subr.mxu0 0.0
      %479 = vmatpush1.msra.mxu0 0.0
      %480 = vmatprep.subr.mxu0 0.0
      %481 = vmatpush1.msra.mxu0 0.0
      %482 = vmatprep.subr.mxu0 0.0
      %483 = vmatpush1.msra.mxu0 0.0
      %484 = vmatprep.subr.mxu0 0.0
      %485 = vmatpush1.msra.mxu0 0.0
      %486 = vmatprep.subr.mxu0 0.0
      %487 = vmatpush1.msra.mxu0 0.0
      %488 = vmatprep.subr.mxu0 0.0
      %489 = vmatpush1.msra.mxu0 0.0
      %490 = vmatprep.subr.mxu0 0.0
      %491 = vmatpush1.msra.mxu0 0.0
      %492 = vmatprep.subr.mxu0 0.0
      %493 = vmatpush1.msra.mxu0 0.0
      %494 = vmatprep.subr.mxu0 0.0
      %495 = vmatpush1.msra.mxu0 0.0
      %496 = vmatprep.mubr.f32.mxu0 0.0
      %497 = vmatmul.mubr.f32.gmra.mrb[0].mxu0 %v409
      %v498 = vpop.f32.mrb[0].mxu0
      %v499 = vadd.f32 %v377, %v498
      %v500 = vpop.f32.mrb[0].mxu0
      %v501 = vadd.f32 %v377, %v500
      %502 = vmatprep.mubr.f32.mxu0 0.0
      %503 = vmatmul.mubr.f32.gmra.mrb[0].mxu0 %v412
      %v504 = vpop.f32.mrb[0].mxu0
      %v505 = vadd.f32 %v381, %v504
      %v506 = vpop.f32.mrb[0].mxu0
      %v507 = vadd.f32 %v381, %v506
      %508 = vmatprep.mubr.f32.mxu0 0.0
      %509 = vmatmul.mubr.f32.gmra.mrb[0].mxu0 %v415
      %v510 = vpop.f32.mrb[0].mxu0
      %v511 = vadd.f32 %v385, %v510
      %v512 = vpop.f32.mrb[0].mxu0
      %v513 = vadd.f32 %v385, %v512
      %514 = vmatprep.mubr.f32.mxu0 0.0
      %515 = vmatmul.mubr.f32.gmra.mrb[0].mxu0 %v418
      %v516 = vpop.f32.mrb[0].mxu0
      %v517 = vadd.f32 %v389, %v516
      %v518 = vpop.f32.mrb[0].mxu0
      %v519 = vadd.f32 %v389, %v518
      %520 = vmatprep.mubr.f32.mxu0 0.0
      %521 = vmatmul.mubr.f32.gmra.mrb[0].mxu0 %v421
      %v522 = vpop.f32.mrb[0].mxu0
      %v523 = vadd.f32 %v393, %v522
      %v524 = vpop.f32.mrb[0].mxu0
      %v525 = vadd.f32 %v393, %v524
      %526 = vmatprep.mubr.f32.mxu0 0.0
      %527 = vmatmul.mubr.f32.gmra.mrb[0].mxu0 %v424
      %v528 = vpop.f32.mrb[0].mxu0
      %v529 = vadd.f32 %v397, %v528
      %v530 = vpop.f32.mrb[0].mxu0
      %v531 = vadd.f32 %v397, %v530
      %532 = vmatprep.mubr.f32.mxu0 0.0
      %533 = vmatmul.mubr.f32.gmra.mrb[0].mxu0 %v427
      %v534 = vpop.f32.mrb[0].mxu0
      %v535 = vadd.f32 %v401, %v534
      %v536 = vpop.f32.mrb[0].mxu0
      %v537 = vadd.f32 %v401, %v536
      %538 = vmatprep.mubr.f32.mxu0 0.0
      %539 = vmatmul.mubr.f32.gmra.mrb[0].mxu0 %v430
      %v540 = vpop.f32.mrb[0].mxu0
      %v541 = vadd.f32 %v405, %v540
      %v542 = vpop.f32.mrb[0].mxu0
      %v543 = vadd.f32 %v405, %v542
      %544 = vdwg.mxu0
      %545 = vmatprep.subr.mxu0 %v338
      %546 = vmatpush1.msra.mxu0 %v337
      %547 = vmatprep.subr.mxu0 %v342
      %548 = vmatpush1.msra.mxu0 %v341
      %549 = vmatprep.subr.mxu0 %v346
      %550 = vmatpush1.msra.mxu0 %v345
      %551 = vmatprep.subr.mxu0 %v350
      %552 = vmatpush1.msra.mxu0 %v349
      %553 = vmatprep.subr.mxu0 %v354
      %554 = vmatpush1.msra.mxu0 %v353
      %555 = vmatprep.subr.mxu0 %v358
      %556 = vmatpush1.msra.mxu0 %v357
      %557 = vmatprep.subr.mxu0 %v362
      %558 = vmatpush1.msra.mxu0 %v361
      %559 = vmatprep.subr.mxu0 %v366
      %560 = vmatpush1.msra.mxu0 %v365
      %561 = vmatprep.subr.mxu0 0.0
      %562 = vmatpush1.msra.mxu0 0.0
      %563 = vmatprep.subr.mxu0 0.0
      %564 = vmatpush1.msra.mxu0 0.0
      %565 = vmatprep.subr.mxu0 0.0
      %566 = vmatpush1.msra.mxu0 0.0
      %567 = vmatprep.subr.mxu0 0.0
      %568 = vmatpush1.msra.mxu0 0.0
      %569 = vmatprep.subr.mxu0 0.0
      %570 = vmatpush1.msra.mxu0 0.0
      %571 = vmatprep.subr.mxu0 0.0
      %572 = vmatpush1.msra.mxu0 0.0
      %573 = vmatprep.subr.mxu0 0.0
      %574 = vmatpush1.msra.mxu0 0.0
      %575 = vmatprep.subr.mxu0 0.0
      %576 = vmatpush1.msra.mxu0 0.0
      %577 = vmatprep.subr.mxu0 0.0
      %578 = vmatpush1.msra.mxu0 0.0
      %579 = vmatprep.subr.mxu0 0.0
      %580 = vmatpush1.msra.mxu0 0.0
      %581 = vmatprep.subr.mxu0 0.0
      %582 = vmatpush1.msra.mxu0 0.0
      %583 = vmatprep.subr.mxu0 0.0
      %584 = vmatpush1.msra.mxu0 0.0
      %585 = vmatprep.subr.mxu0 0.0
      %586 = vmatpush1.msra.mxu0 0.0
      %587 = vmatprep.subr.mxu0 0.0
      %588 = vmatpush1.msra.mxu0 0.0
      %589 = vmatprep.subr.mxu0 0.0
      %590 = vmatpush1.msra.mxu0 0.0
      %591 = vmatprep.subr.mxu0 0.0
      %592 = vmatpush1.msra.mxu0 0.0
      %593 = vmatprep.subr.mxu0 0.0
      %594 = vmatpush1.msra.mxu0 0.0
      %595 = vmatprep.subr.mxu0 0.0
      %596 = vmatpush1.msra.mxu0 0.0
      %597 = vmatprep.subr.mxu0 0.0
      %598 = vmatpush1.msra.mxu0 0.0
      %599 = vmatprep.subr.mxu0 0.0
      %600 = vmatpush1.msra.mxu0 0.0
      %601 = vmatprep.subr.mxu0 0.0
      %602 = vmatpush1.msra.mxu0 0.0
      %603 = vmatprep.subr.mxu0 0.0
      %604 = vmatpush1.msra.mxu0 0.0
      %605 = vmatprep.subr.mxu0 0.0
      %606 = vmatpush1.msra.mxu0 0.0
      %607 = vmatprep.subr.mxu0 0.0
      %608 = vmatpush1.msra.mxu0 0.0
      %609 = vmatprep.mubr.f32.mxu0 0.0
      %610 = vmatmul.mubr.f32.gmra.mrb[0].mxu0 %v409
      %v611 = vpop.f32.mrb[0].mxu0
      %v612 = vadd.f32 %v377, %v611
      %v613 = vpop.f32.mrb[0].mxu0
      %v614 = vadd.f32 %v377, %v613
      %615 = vmatprep.mubr.f32.mxu0 0.0
      %616 = vmatmul.mubr.f32.gmra.mrb[0].mxu0 %v412
      %v617 = vpop.f32.mrb[0].mxu0
      %v618 = vadd.f32 %v381, %v617
      %v619 = vpop.f32.mrb[0].mxu0
      %v620 = vadd.f32 %v381, %v619
      %621 = vmatprep.mubr.f32.mxu0 0.0
      %622 = vmatmul.mubr.f32.gmra.mrb[0].mxu0 %v415
      %v623 = vpop.f32.mrb[0].mxu0
      %v624 = vadd.f32 %v385, %v623
      %v625 = vpop.f32.mrb[0].mxu0
      %v626 = vadd.f32 %v385, %v625
      %627 = vmatprep.mubr.f32.mxu0 0.0
      %628 = vmatmul.mubr.f32.gmra.mrb[0].mxu0 %v418
      %v629 = vpop.f32.mrb[0].mxu0
      %v630 = vadd.f32 %v389, %v629
      %v631 = vpop.f32.mrb[0].mxu0
      %v632 = vadd.f32 %v389, %v631
      %633 = vmatprep.mubr.f32.mxu0 0.0
      %634 = vmatmul.mubr.f32.gmra.mrb[0].mxu0 %v421
      %v635 = vpop.f32.mrb[0].mxu0
      %v636 = vadd.f32 %v393, %v635
      %v637 = vpop.f32.mrb[0].mxu0
      %v638 = vadd.f32 %v393, %v637
      %639 = vmatprep.mubr.f32.mxu0 0.0
      %640 = vmatmul.mubr.f32.gmra.mrb[0].mxu0 %v424
      %v641 = vpop.f32.mrb[0].mxu0
      %v642 = vadd.f32 %v397, %v641
      %v643 = vpop.f32.mrb[0].mxu0
      %v644 = vadd.f32 %v397, %v643
      %645 = vmatprep.mubr.f32.mxu0 0.0
      %646 = vmatmul.mubr.f32.gmra.mrb[0].mxu0 %v427
      %v647 = vpop.f32.mrb[0].mxu0
      %v648 = vadd.f32 %v401, %v647
      %v649 = vpop.f32.mrb[0].mxu0
      %v650 = vadd.f32 %v401, %v649
      %651 = vmatprep.mubr.f32.mxu0 0.0
      %652 = vmatmul.mubr.f32.gmra.mrb[0].mxu0 %v430
      %v653 = vpop.f32.mrb[0].mxu0
      %v654 = vadd.f32 %v405, %v653
      %v655 = vpop.f32.mrb[0].mxu0
      %v656 = vadd.f32 %v405, %v655
      %657 = vdwg.mxu0
      %v658 = vmax.f32 %v499, 0.0
      %v659 = vmax.f32 %v501, 0.0
      %v660 = vmax.f32 %v612, 0.0
      %v661 = vmax.f32 %v614, 0.0
      %v662 = vmax.f32 %v505, 0.0
      %v663 = vmax.f32 %v507, 0.0
      %v664 = vmax.f32 %v618, 0.0
      %v665 = vmax.f32 %v620, 0.0
      %v666 = vmax.f32 %v511, 0.0
      %v667 = vmax.f32 %v513, 0.0
      %v668 = vmax.f32 %v624, 0.0
      %v669 = vmax.f32 %v626, 0.0
      %v670 = vmax.f32 %v517, 0.0
      %v671 = vmax.f32 %v519, 0.0
      %v672 = vmax.f32 %v630, 0.0
      %v673 = vmax.f32 %v632, 0.0
      %v674 = vmax.f32 %v523, 0.0
      %v675 = vmax.f32 %v525, 0.0
      %v676 = vmax.f32 %v636, 0.0
      %v677 = vmax.f32 %v638, 0.0
      %v678 = vmax.f32 %v529, 0.0
      %v679 = vmax.f32 %v531, 0.0
      %v680 = vmax.f32 %v642, 0.0
      %v681 = vmax.f32 %v644, 0.0
      %v682 = vmax.f32 %v535, 0.0
      %v683 = vmax.f32 %v537, 0.0
      %v684 = vmax.f32 %v648, 0.0
      %v685 = vmax.f32 %v650, 0.0
      %v686 = vmax.f32 %v541, 0.0
      %v687 = vmax.f32 %v543, 0.0
      %v688 = vmax.f32 %v654, 0.0
      %v689 = vmax.f32 %v656, 0.0
      %v690 = vld [vmem:[%s1 + $0x40] sm:$0x1]
      %v691 = vld [vmem:[%s1 + $0x41] sm:$0x1]
      %693 = vset.pattern.permute.xlu0 0
      %694 = vperm.xlu0 %693, %v691
      %v695 = vpop.permute.xlu0 %694
      %v698 = vsel %vm407, %v690, 0
      %700 = vmatprep.subr.mxu0 %v659
      %701 = vmatpush1.msra.mxu0 %v658
      %702 = vmatprep.subr.mxu0 %v663
      %703 = vmatpush1.msra.mxu0 %v662
      %704 = vmatprep.subr.mxu0 %v667
      %705 = vmatpush1.msra.mxu0 %v666
      %706 = vmatprep.subr.mxu0 %v671
      %707 = vmatpush1.msra.mxu0 %v670
      %708 = vmatprep.subr.mxu0 %v675
      %709 = vmatpush1.msra.mxu0 %v674
      %710 = vmatprep.subr.mxu0 %v679
      %711 = vmatpush1.msra.mxu0 %v678
      %712 = vmatprep.subr.mxu0 %v683
      %713 = vmatpush1.msra.mxu0 %v682
      %714 = vmatprep.subr.mxu0 %v687
      %715 = vmatpush1.msra.mxu0 %v686
      %716 = vmatprep.subr.mxu0 0.0
      %717 = vmatpush1.msra.mxu0 0.0
      %718 = vmatprep.subr.mxu0 0.0
      %719 = vmatpush1.msra.mxu0 0.0
      %720 = vmatprep.subr.mxu0 0.0
      %721 = vmatpush1.msra.mxu0 0.0
      %722 = vmatprep.subr.mxu0 0.0
      %723 = vmatpush1.msra.mxu0 0.0
      %724 = vmatprep.subr.mxu0 0.0
      %725 = vmatpush1.msra.mxu0 0.0
      %726 = vmatprep.subr.mxu0 0.0
      %727 = vmatpush1.msra.mxu0 0.0
      %728 = vmatprep.subr.mxu0 0.0
      %729 = vmatpush1.msra.mxu0 0.0
      %730 = vmatprep.subr.mxu0 0.0
      %731 = vmatpush1.msra.mxu0 0.0
      %732 = vmatprep.subr.mxu0 0.0
      %733 = vmatpush1.msra.mxu0 0.0
      %734 = vmatprep.subr.mxu0 0.0
      %735 = vmatpush1.msra.mxu0 0.0
      %736 = vmatprep.subr.mxu0 0.0
      %737 = vmatpush1.msra.mxu0 0.0
      %738 = vmatprep.subr.mxu0 0.0
      %739 = vmatpush1.msra.mxu0 0.0
      %740 = vmatprep.subr.mxu0 0.0
      %741 = vmatpush1.msra.mxu0 0.0
      %742 = vmatprep.subr.mxu0 0.0
      %743 = vmatpush1.msra.mxu0 0.0
      %744 = vmatprep.subr.mxu0 0.0
      %745 = vmatpush1.msra.mxu0 0.0
      %746 = vmatprep.subr.mxu0 0.0
      %747 = vmatpush1.msra.mxu0 0.0
      %748 = vmatprep.subr.mxu0 0.0
      %749 = vmatpush1.msra.mxu0 0.0
      %750 = vmatprep.subr.mxu0 0.0
      %751 = vmatpush1.msra.mxu0 0.0
      %752 = vmatprep.subr.mxu0 0.0
      %753 = vmatpush1.msra.mxu0 0.0
      %754 = vmatprep.subr.mxu0 0.0
      %755 = vmatpush1.msra.mxu0 0.0
      %756 = vmatprep.subr.mxu0 0.0
      %757 = vmatpush1.msra.mxu0 0.0
      %758 = vmatprep.subr.mxu0 0.0
      %759 = vmatpush1.msra.mxu0 0.0
      %760 = vmatprep.subr.mxu0 0.0
      %761 = vmatpush1.msra.mxu0 0.0
      %762 = vmatprep.subr.mxu0 0.0
      %763 = vmatpush1.msra.mxu0 0.0
      %764 = vmatprep.mubr.f32.mxu0 0.0
      %765 = vmatmul.mubr.f32.gmra.mrb[0].mxu0 %v698
      %v766 = vpop.f32.mrb[0].mxu0
      %v767 = vadd.f32 %v695, %v766
      %v768 = vpop.f32.mrb[0].mxu0
      %v769 = vadd.f32 %v695, %v768
      %770 = vdwg.mxu0
      %771 = vmatprep.subr.mxu0 %v661
      %772 = vmatpush1.msra.mxu0 %v660
      %773 = vmatprep.subr.mxu0 %v665
      %774 = vmatpush1.msra.mxu0 %v664
      %775 = vmatprep.subr.mxu0 %v669
      %776 = vmatpush1.msra.mxu0 %v668
      %777 = vmatprep.subr.mxu0 %v673
      %778 = vmatpush1.msra.mxu0 %v672
      %779 = vmatprep.subr.mxu0 %v677
      %780 = vmatpush1.msra.mxu0 %v676
      %781 = vmatprep.subr.mxu0 %v681
      %782 = vmatpush1.msra.mxu0 %v680
      %783 = vmatprep.subr.mxu0 %v685
      %784 = vmatpush1.msra.mxu0 %v684
      %785 = vmatprep.subr.mxu0 %v689
      %786 = vmatpush1.msra.mxu0 %v688
      %787 = vmatprep.subr.mxu0 0.0
      %788 = vmatpush1.msra.mxu0 0.0
      %789 = vmatprep.subr.mxu0 0.0
      %790 = vmatpush1.msra.mxu0 0.0
      %791 = vmatprep.subr.mxu0 0.0
      %792 = vmatpush1.msra.mxu0 0.0
      %793 = vmatprep.subr.mxu0 0.0
      %794 = vmatpush1.msra.mxu0 0.0
      %795 = vmatprep.subr.mxu0 0.0
      %796 = vmatpush1.msra.mxu0 0.0
      %797 = vmatprep.subr.mxu0 0.0
      %798 = vmatpush1.msra.mxu0 0.0
      %799 = vmatprep.subr.mxu0 0.0
      %800 = vmatpush1.msra.mxu0 0.0
      %801 = vmatprep.subr.mxu0 0.0
      %802 = vmatpush1.msra.mxu0 0.0
      %803 = vmatprep.subr.mxu0 0.0
      %804 = vmatpush1.msra.mxu0 0.0
      %805 = vmatprep.subr.mxu0 0.0
      %806 = vmatpush1.msra.mxu0 0.0
      %807 = vmatprep.subr.mxu0 0.0
      %808 = vmatpush1.msra.mxu0 0.0
      %809 = vmatprep.subr.mxu0 0.0
      %810 = vmatpush1.msra.mxu0 0.0
      %811 = vmatprep.subr.mxu0 0.0
      %812 = vmatpush1.msra.mxu0 0.0
      %813 = vmatprep.subr.mxu0 0.0
      %814 = vmatpush1.msra.mxu0 0.0
      %815 = vmatprep.subr.mxu0 0.0
      %816 = vmatpush1.msra.mxu0 0.0
      %817 = vmatprep.subr.mxu0 0.0
      %818 = vmatpush1.msra.mxu0 0.0
      %819 = vmatprep.subr.mxu0 0.0
      %820 = vmatpush1.msra.mxu0 0.0
      %821 = vmatprep.subr.mxu0 0.0
      %822 = vmatpush1.msra.mxu0 0.0
      %823 = vmatprep.subr.mxu0 0.0
      %824 = vmatpush1.msra.mxu0 0.0
      %825 = vmatprep.subr.mxu0 0.0
      %826 = vmatpush1.msra.mxu0 0.0
      %827 = vmatprep.subr.mxu0 0.0
      %828 = vmatpush1.msra.mxu0 0.0
      %829 = vmatprep.subr.mxu0 0.0
      %830 = vmatpush1.msra.mxu0 0.0
      %831 = vmatprep.subr.mxu0 0.0
      %832 = vmatpush1.msra.mxu0 0.0
      %833 = vmatprep.subr.mxu0 0.0
      %834 = vmatpush1.msra.mxu0 0.0
      %835 = vmatprep.mubr.f32.mxu0 0.0
      %836 = vmatmul.mubr.f32.gmra.mrb[0].mxu0 %v698
      %v837 = vpop.f32.mrb[0].mxu0
      %v838 = vadd.f32 %v695, %v837
      %v839 = vpop.f32.mrb[0].mxu0
      %v840 = vadd.f32 %v695, %v839
      %841 = vdwg.mxu0
      %v846 = vcombine.low %v767, %v769
      %v847 = vcombine.low %v838, %v840
      %v849 = vunpack.c.l.s4 1966171168
      %v850 = vunpack.c.0.s8 %v849
      %v851 = vlaneseq
      %v852 = vshrl.u32 %v851, 7
      %v853 = vsub.s32 %v850, %v852
      %v854 = vrot.slane %v846, %v853
      %v856 = vunpack.c.l.s4 1966171168
      %v857 = vunpack.c.0.s8 %v856
      %v858 = vlaneseq
      %v859 = vshrl.u32 %v858, 7
      %v860 = vsub.s32 %v857, %v859
      %v861 = vrot.slane %v847, %v860
      %v862 = vcombine.low %v854, %v861
      %v864 = vunpack.c.l.s4 1966171168
      %v865 = vunpack.c.0.s8 %v864
      %v866 = vlaneseq
      %v867 = vshrl.u32 %v866, 7
      %v868 = vsub.s32 %v865, %v867
      %v869 = vrot.slane %v862, %v868
      %v871 = vlaneseq
      %vm872 = vcmp.ge.s32.totalorder %v871, 0
      %vm873 = vcmp.lt.s32.totalorder %v871, 512
      %vm874 = vmand %vm872, %vm873
      %875 = vst.msk [vmem:[%s167] sm:$0xf] %vm874, %v869
      %s876 = smul.u32 4, %s14
      %p877 = scmp.lt.s32.totalorder %s876, 7
      %s878 = scalar_select %p877, %s876, 7
      %s879 = scalar_lea.vmem %s3, %s878
      // Predicated region
      $region33: #{mlp_forward.1} parent=31 // pred_check
        %p880 = pneg %p100
      $region34: #{mlp_forward.1} parent=31 // pred_check_branch
        %882 = sbr.rel (%p880) target = $region36
      $region35: #{mlp_forward.1} parent=31 // pred_region
        %s883 = smul.u32 4, %s14
      $region36: #{mlp_forward.1} parent=31 // pred_fallthru
        _
    $region32: #{mlp_forward.1} parent=5 // pred_fallthru
      _
    %p884 = scmp.le.s32.totalorder 2, %s9
    // Predicated region
    $region37: #{mlp_forward.1} parent=5 // pred_check
      %p885 = pneg %p884
    $region38: #{mlp_forward.1} parent=5 // pred_check_branch
      %887 = sbr.rel (%p885) target = $region40
    $region39: #{mlp_forward.1} parent=5 // pred_region
      %s888 = ssub.s32 %s9, 2
      // Predicated region
      $region41: #{mlp_forward.1} parent=39 // pred_check
        %p889 = pneg %p106
      $region42: #{mlp_forward.1} parent=39 // pred_check_branch
        %891 = sbr.rel (%p889) target = $region44
      $region43: #{mlp_forward.1} parent=39 // pred_region
        %s892 = smul.u32 4, %s15
        %p893 = scmp.lt.s32.totalorder %s892, 7
        %s894 = scalar_select %p893, %s892, 7
        %s895 = scalar_lea.vmem %s3, %s894
      $region44: #{mlp_forward.1} parent=39 // pred_fallthru
        _
    $region40: #{mlp_forward.1} parent=5 // pred_fallthru
      _
  $region6: #{mlp_forward.1} parent=0 // loop_footer
    %s13 = sadd.s32 1, %s9
  $region7: #{mlp_forward.1} parent=0 // loop_footer_branch
    %8 = sbr.rel target = $region3
  $region8: #{mlp_forward.1} parent=0 // loop_exit
    _

</llo_original>
